<compile_context>
chip_gen: v7x
topology: tpu7x:2x2x1
jax: 0.10.0
libtpu: 0.0.40
codegen_flags: <defaults>
</compile_context>

<pallas_src>
import functools
import math

import jax
import jax.numpy as jnp
from jax.experimental import pallas as pl
from jax.experimental.pallas import tpu as pltpu

_VMEM_LIMIT = 64 * 1024 * 1024  # v5e/v6e have 128 MiB; actual use stays far below


def _compiler_params(n_grid_axes):
    return pltpu.CompilerParams(
        dimension_semantics=("parallel",) * n_grid_axes,
        vmem_limit_bytes=_VMEM_LIMIT,
    )


def _vmem_full():
    """Whole-array, single-buffered VMEM residency for grid-constant weights."""
    return pl.BlockSpec(memory_space=pltpu.MemorySpace.VMEM)


def _row_tile(m, cap=512):
    """Largest row tile <= cap that evenly divides m (multiple of 8 if tiled)."""
    if m <= cap:
        return m
    for t in range(cap, 7, -8):
        if m % t == 0:
            return t
    # TODO(synk): pad M instead of falling back to the whole array for awkward M.
    return m


def _batch_tile(b, s_pad, cap_rows=512):
    """How many batch elements to fold per attention grid step."""
    tb = min(b, max(1, cap_rows // s_pad))
    while b % tb:
        tb -= 1
    return tb


# ------------------------------------------------------------------ kernels --

def _patch_embed_kernel(x_ref, w_ref, b_ref, o_ref):
    """(tm, K) @ (K, D) + b  — bf16 MXU, f32 accumulation, bf16 store."""
    y = jnp.dot(x_ref[...].astype(jnp.bfloat16), w_ref[...],
                preferred_element_type=jnp.float32)
    o_ref[...] = (y + b_ref[...]).astype(o_ref.dtype)


def _attn_block_kernel(h_ref, ln_g_ref, ln_b_ref, wqkv_ref, bqkv_ref,
                       wo_ref, bo_ref, o_ref, *, n_heads, seq_len, eps, scale):
    """Fused pre-norm MHA sub-layer for a tile of `tb` batch elements.

    LN -> fused QKV projection -> per-head masked softmax attention ->
    single D-contraction output projection -> residual add.  All in VMEM;
    only the (tb, S_pad, D) result is written back (lane-dense store).
    """
    tb, s_pad, d_model = h_ref.shape
    dh = d_model // n_heads

    x = h_ref[...].astype(jnp.float32)                      # (tb, S_pad, D)
    xf = x.reshape(tb * s_pad, d_model)

    # --- LayerNorm (f32 VPU math) ------------------------------------------
    mu = jnp.mean(xf, axis=-1, keepdims=True)
    var = jnp.mean((xf - mu) ** 2, axis=-1, keepdims=True)
    xn = (xf - mu) * jax.lax.rsqrt(var + eps)
    xn = xn * ln_g_ref[...] + ln_b_ref[...]

    # --- fused QKV projection (bf16 MXU, f32 accumulate) --------------------
    qkv = jnp.dot(xn.astype(jnp.bfloat16), wqkv_ref[...],
                  preferred_element_type=jnp.float32) + bqkv_ref[...]
    qkv = qkv.reshape(tb, s_pad, 3 * d_model)

    # key-padding mask (seq_len is a trace-time constant); scores stay f32
    key_mask = jax.lax.broadcasted_iota(jnp.int32, (1, s_pad, s_pad), 2) < seq_len

    head_outs = []
    for h in range(n_heads):
        q_h = qkv[:, :, h * dh:(h + 1) * dh]
        k_h = qkv[:, :, d_model + h * dh:d_model + (h + 1) * dh]
        v_h = qkv[:, :, 2 * d_model + h * dh:2 * d_model + (h + 1) * dh]
        # q . k^T : batch over tb, contract dh (no materialized transpose)
        s = jax.lax.dot_general(
            q_h.astype(jnp.bfloat16), k_h.astype(jnp.bfloat16),
            (((2,), (2,)), ((0,), (0,))),
            preferred_element_type=jnp.float32) * scale      # (tb, S_pad, S_pad)
        s = jnp.where(key_mask, s, jnp.float32(-1e30))
        s = s - jnp.max(s, axis=-1, keepdims=True)
        p = jnp.exp(s)
        p = p * pl.reciprocal(jnp.sum(p, axis=-1, keepdims=True), approx=True)
        o_h = jax.lax.dot_general(
            p.astype(jnp.bfloat16), v_h.astype(jnp.bfloat16),
            (((2,), (1,)), ((0,), (0,))),
            preferred_element_type=jnp.float32)               # (tb, S_pad, dh)
        head_outs.append(o_h.astype(jnp.bfloat16))

    # one full D-contraction output projection instead of n_heads K=dh matmuls
    attn = jnp.concatenate(head_outs, axis=-1).reshape(tb * s_pad, d_model)
    proj = jnp.dot(attn, wo_ref[...],
                   preferred_element_type=jnp.float32) + bo_ref[...]

    out = xf + proj                                           # residual add (f32)
    o_ref[...] = out.reshape(tb, s_pad, d_model).astype(o_ref.dtype)


def _ffn_block_kernel(x_ref, ln_g_ref, ln_b_ref, w1_ref, b1_ref,
                      w2_ref, b2_ref, o_ref, *, eps):
    """Fused pre-norm feed-forward sub-layer for one row tile.

    LN -> Linear -> exact GELU (f32, matches nn.GELU default) -> Linear -> +res.
    """
    x = x_ref[...].astype(jnp.float32)                        # (tm, D)
    mu = jnp.mean(x, axis=-1, keepdims=True)
    var = jnp.mean((x - mu) ** 2, axis=-1, keepdims=True)
    xn = (x - mu) * jax.lax.rsqrt(var + eps)
    xn = xn * ln_g_ref[...] + ln_b_ref[...]

    h1 = jnp.dot(xn.astype(jnp.bfloat16), w1_ref[...],
                 preferred_element_type=jnp.float32) + b1_ref[...]
    # exact GELU kept for PyTorch parity; approximate=True is faster on v6e/v7x
    h1 = jax.nn.gelu(h1, approximate=False)
    h2 = jnp.dot(h1.astype(jnp.bfloat16), w2_ref[...],
                 preferred_element_type=jnp.float32) + b2_ref[...]
    o_ref[...] = (x + h2).astype(o_ref.dtype)


# ----------------------------------------------------------------- wrappers --

def patch_embed(x2d, w_bf16, b):
    M, K = x2d.shape
    N = w_bf16.shape[1]
    tm = _row_tile(M)
    return pl.pallas_call(
        _patch_embed_kernel,
        out_shape=jax.ShapeDtypeStruct((M, N), jnp.bfloat16),
        grid=(M // tm,),
        in_specs=[
            pl.BlockSpec((tm, K), lambda i: (i, 0)),
            _vmem_full(),            # (K, D) bf16 weight, resident once
            _vmem_full(),            # (1, D) bias
        ],
        out_specs=pl.BlockSpec((tm, N), lambda i: (i, 0)),
        compiler_params=_compiler_params(1),
    )(x2d, w_bf16, b)


def attn_sublayer(h, blk, *, n_heads, seq_len, scale, eps=1e-5):
    B, S_pad, D = h.shape
    tb = _batch_tile(B, S_pad)
    kern = functools.partial(_attn_block_kernel, n_heads=n_heads,
                             seq_len=seq_len, eps=eps, scale=scale)
    return pl.pallas_call(
        kern,
        out_shape=jax.ShapeDtypeStruct((B, S_pad, D), jnp.bfloat16),
        grid=(B // tb,),
        in_specs=[
            pl.BlockSpec((tb, S_pad, D), lambda b: (b, 0, 0)),
            _vmem_full(),            # ln1 gamma (1, D)
            _vmem_full(),            # ln1 beta  (1, D)
            _vmem_full(),            # fused Wqkv (D, 3D) bf16
            _vmem_full(),            # fused bqkv (1, 3D)
            _vmem_full(),            # Wo (D, D) bf16
            _vmem_full(),            # bo (1, D)
        ],
        out_specs=pl.BlockSpec((tb, S_pad, D), lambda b: (b, 0, 0)),
        compiler_params=_compiler_params(1),
    )(h, blk["ln1_g"], blk["ln1_b"], blk["wqkv"], blk["bqkv"],
      blk["wo"], blk["bo"])


def ffn_sublayer(x2d, blk, *, eps=1e-5):
    M, D = x2d.shape
    tm = _row_tile(M)
    kern = functools.partial(_ffn_block_kernel, eps=eps)
    return pl.pallas_call(
        kern,
        out_shape=jax.ShapeDtypeStruct((M, D), jnp.bfloat16),
        grid=(M // tm,),
        in_specs=[
            pl.BlockSpec((tm, D), lambda i: (i, 0)),
            _vmem_full(),            # ln2 gamma (1, D)
            _vmem_full(),            # ln2 beta  (1, D)
            _vmem_full(),            # W1 (D, F) bf16
            _vmem_full(),            # b1 (1, F)
            _vmem_full(),            # W2 (F, D) bf16
            _vmem_full(),            # b2 (1, D)
        ],
        out_specs=pl.BlockSpec((tm, D), lambda i: (i, 0)),
        compiler_params=_compiler_params(1),
    )(x2d, blk["ln2_g"], blk["ln2_b"], blk["w1"], blk["b1"],
      blk["w2"], blk["b2"])


# ------------------------------------------------------------ model pieces --

def sinusoidal_pe(max_len, d_model):
    pos = jnp.arange(max_len, dtype=jnp.float32)[:, None]
    div = jnp.exp(jnp.arange(0, d_model, 2, dtype=jnp.float32)
                  * (-math.log(10000.0) / d_model))
    pe = jnp.zeros((max_len, d_model), jnp.float32)
    pe = pe.at[:, 0::2].set(jnp.sin(pos * div))
    pe = pe.at[:, 1::2].set(jnp.cos(pos * div))
    return pe


def init_params(key, *, in_channels, patch_size, d_model, n_blocks, n_heads, ff_size):
    """All matmul weights pre-cast to bf16, QKV pre-fused; biases/LN stay f32."""
    def nrm(k, shape, scale=0.02):
        return scale * jax.random.normal(k, shape, jnp.float32)

    keys = jax.random.split(key, 1 + n_blocks)
    p = {
        # patch embedder: conv weight (d_model, C, p, p) flattened to (C*p*p, D)
        "patch_w": nrm(keys[0], (in_channels * patch_size * patch_size,
                                 d_model)).astype(jnp.bfloat16),
        "patch_b": jnp.zeros((1, d_model), jnp.float32),
        "cls": jnp.zeros((1, 1, d_model), jnp.float32),
    }
    blocks = []
    for i in range(n_blocks):
        bk = jax.random.split(keys[1 + i], 6)
        wq = nrm(bk[0], (d_model, d_model))
        wk = nrm(bk[1], (d_model, d_model))
        wv = nrm(bk[2], (d_model, d_model))
        blk = {
            "ln1_g": jnp.ones((1, d_model), jnp.float32),
            "ln1_b": jnp.zeros((1, d_model), jnp.float32),
            "ln2_g": jnp.ones((1, d_model), jnp.float32),
            "ln2_b": jnp.zeros((1, d_model), jnp.float32),
            "wqkv": jnp.concatenate([wq, wk, wv], axis=1).astype(jnp.bfloat16),
            "bqkv": jnp.zeros((1, 3 * d_model), jnp.float32),
            "wo": nrm(bk[3], (d_model, d_model)).astype(jnp.bfloat16),
            "bo": jnp.zeros((1, d_model), jnp.float32),
            "w1": nrm(bk[4], (d_model, ff_size)).astype(jnp.bfloat16),
            "b1": jnp.zeros((1, ff_size), jnp.float32),
            "w2": nrm(bk[5], (ff_size, d_model)).astype(jnp.bfloat16),
            "b2": jnp.zeros((1, d_model), jnp.float32),
        }
        blocks.append(blk)
    p["blocks"] = blocks
    return p


def vit_forward(params, x, *, patch_size, d_model, n_heads):
    B, C, H, W = x.shape
    p = patch_size
    nh, nw = H // p, W // p
    n_patches = nh * nw
    assert d_model % 2 == 0, "sinusoidal PE needs even d_model"
    assert d_model % n_heads == 0
    assert n_patches <= 100, "PositionalEncoding(max_len=100) in the reference"

    # --- PatchEmbedder (conv k=s=p  ==  patchify + matmul in Pallas) -------
    patches = x.reshape(B, C, nh, p, nw, p)
    patches = jnp.transpose(patches, (0, 2, 4, 1, 3, 5))      # (B, nh, nw, C, p, p)
    patches = patches.reshape(B * n_patches, C * p * p)
    emb = patch_embed(patches, params["patch_w"], params["patch_b"])
    emb = emb.reshape(B, n_patches, d_model)

    # --- PositionalEncoding (sinusoidal, added before cls concat, as in spec)
    pe = sinusoidal_pe(100, d_model)[:n_patches]
    emb = emb.astype(jnp.float32) + pe[None, :, :]

    # --- cls token, pad S up to a sublane multiple of 8, bf16 residual stream
    cls = jnp.broadcast_to(params["cls"], (B, 1, d_model))
    h = jnp.concatenate([cls, emb], axis=1)                   # (B, S, D)
    S = n_patches + 1
    S_pad = ((S + 7) // 8) * 8
    if S_pad != S:
        h = jnp.pad(h, ((0, 0), (0, S_pad - S), (0, 0)))      # padded keys masked
    h = h.astype(jnp.bfloat16)                                # bf16 between kernels

    scale = 1.0 / math.sqrt(d_model // n_heads)

    # --- Encoder blocks: two fused Pallas kernels per block -----------------
    for blk in params["blocks"]:
        h = attn_sublayer(h, blk, n_heads=n_heads, seq_len=S, scale=scale)
        h2d = ffn_sublayer(h.reshape(B * S_pad, d_model), blk)
        h = h2d.reshape(B, S_pad, d_model)

    # --- take cls embedding --------------------------------------------------
    return h[:, 0, :].astype(jnp.float32)


# ---------------------------------------------------------------------- main --

if __name__ == "__main__":
    # Small config: img 16x16, 4 channels, patch 8 -> 4 patches, S=5 (pad to 8).
    # d_model/ff chosen as multiples of 128 so every store is lane-dense.
    B, C, IMG, PATCH = 2, 4, 16, 8
    D_MODEL, N_BLOCKS, N_HEADS, FF = 128, 2, 4, 256

    key = jax.random.PRNGKey(0)
    k_x, k_p = jax.random.split(key)
    x = jax.random.normal(k_x, (B, C, IMG, IMG), jnp.float32)
    params = init_params(k_p, in_channels=C, patch_size=PATCH, d_model=D_MODEL,
                         n_blocks=N_BLOCKS, n_heads=N_HEADS, ff_size=FF)

    out = vit_forward(params, x, patch_size=PATCH, d_model=D_MODEL, n_heads=N_HEADS)
    out = jax.block_until_ready(out)
    assert out.shape == (B, D_MODEL), out.shape
    assert bool(jnp.all(jnp.isfinite(out)))
    print("KERNEL_OK")
</pallas_src>

<mosaic_0001>
module attributes {stable_mosaic.version = 11 : i64} {
  func.func @_patch_embed_kernel(%arg0: i32, %arg1: memref<8x256xf32, #tpu.memory_space<vmem>>, %arg2: memref<256x128xbf16, #tpu.memory_space<vmem>>, %arg3: memref<1x128xf32, #tpu.memory_space<vmem>>, %arg4: memref<8x128xbf16, #tpu.memory_space<vmem>>) attributes {dimension_semantics = [#tpu.dimension_semantics<parallel>], iteration_bounds = array<i64: 1>, scalar_prefetch = 0 : i64, scratch_operands = 0 : i64, tpu.core_type = #tpu.core_type<tc>, window_params = [{transform_indices = @transform_0, window_bounds = array<i64: 8, 256>}, {pipeline_mode = #tpu.pipeline_mode<synchronous>, transform_indices = @transform_1, window_bounds = array<i64: 256, 128>}, {pipeline_mode = #tpu.pipeline_mode<synchronous>, transform_indices = @transform_2, window_bounds = array<i64: 1, 128>}, {transform_indices = @transform_3, window_bounds = array<i64: 8, 128>}]} {
    %c0 = arith.constant 0 : index
    %c0_0 = arith.constant 0 : index
    %0 = vector.load %arg1[%c0, %c0_0] : memref<8x256xf32, #tpu.memory_space<vmem>>, vector<8x256xf32>
    %1 = arith.truncf %0 : vector<8x256xf32> to vector<8x256xbf16>
    %c0_1 = arith.constant 0 : index
    %c0_2 = arith.constant 0 : index
    %2 = vector.load %arg2[%c0_1, %c0_2] : memref<256x128xbf16, #tpu.memory_space<vmem>>, vector<256x128xbf16>
    %cst = arith.constant dense<0.000000e+00> : vector<8x128xf32>
    %3 = tpu.matmul %1, %2, %cst {dimension_numbers = #tpu.dot_dimension_numbers<[1], [0], [0], [1], [0, 0, 1, 1], [], []>} : vector<8x256xbf16>, vector<256x128xbf16>, vector<8x128xf32> -> vector<8x128xf32>
    %c0_3 = arith.constant 0 : index
    %c0_4 = arith.constant 0 : index
    %4 = vector.load %arg3[%c0_3, %c0_4] : memref<1x128xf32, #tpu.memory_space<vmem>>, vector<1x128xf32>
    %5 = vector.broadcast %4 : vector<1x128xf32> to vector<8x128xf32>
    %6 = arith.addf %3, %5 : vector<8x128xf32>
    %7 = arith.truncf %6 : vector<8x128xf32> to vector<8x128xbf16>
    %c0_5 = arith.constant 0 : index
    %c0_6 = arith.constant 0 : index
    %8 = vector.load %arg4[%c0_5, %c0_6] : memref<8x128xbf16, #tpu.memory_space<vmem>>, vector<8x128xbf16>
    tpu.vector_store %arg4[%c0_5, %c0_6], %7 {strides = array<i32>} : memref<8x128xbf16, #tpu.memory_space<vmem>>, vector<8x128xbf16>,
    return
  }
  func.func @transform_0(%arg0: i32) -> (i32, i32) {
    %c0_i32 = arith.constant 0 : i32
    %c0_i32_0 = arith.constant 0 : i32
    return %arg0, %c0_i32 : i32, i32
  }
  func.func @transform_1(%arg0: i32) -> (i32, i32) {
    %c0_i32 = arith.constant 0 : i32
    %c0_i32_0 = arith.constant 0 : i32
    %c0_i32_1 = arith.constant 0 : i32
    return %c0_i32, %c0_i32_0 : i32, i32
  }
  func.func @transform_2(%arg0: i32) -> (i32, i32) {
    %c0_i32 = arith.constant 0 : i32
    %c0_i32_0 = arith.constant 0 : i32
    %c0_i32_1 = arith.constant 0 : i32
    return %c0_i32, %c0_i32_0 : i32, i32
  }
  func.func @transform_3(%arg0: i32) -> (i32, i32) {
    %c0_i32 = arith.constant 0 : i32
    %c0_i32_0 = arith.constant 0 : i32
    return %arg0, %c0_i32 : i32, i32
  }
}

</mosaic_0001>

<llo_original>
// kernel: tpu_custom_call.1
$region0: #{tpu_custom_call.1}
  #allocation0 [shape = 'u32[]', space=smem, size = 0x4, offset = 0x4, fixed_abs, tag = 'smem constant byte address 0x4 - core index']
  #allocation1 [shape = 'u32[144,128]{1,0:T(1,128)}', space=vmem, size = 0x12000, scoped, tag = 'internal scratch']
  %s0 = inlined_call_operand.hbm [shape: f32[8,256], index: 0, kind: input, shape index: {}]
  %s1 = inlined_call_operand.hbm [shape: bf16[256,128], index: 1, kind: input, shape index: {}]
  %s2 = inlined_call_operand.hbm [shape: f32[1,128], index: 2, kind: input, shape index: {}]
  %s3 = inlined_call_operand.hbm [shape: bf16[8,128], index: 3, kind: output, shape index: {}]
  %s4 = sld [smem:[#allocation0]]
  $region34: #{tpu_custom_call.1} parent=0
    _
  %s6 = ssub.s32 1, %s4
  %s7 = scalar_select 0, %s6, %s4
  $region1: #{tpu_custom_call.1} parent=0
    #allocation2 [shape = 'u8[8192]{0}', space=vmem, size = 0x2000, scoped, tag = 'input window, operand 0, single buffered']
    #allocation3 [shape = 's32[1]{0}', space=sflag, size = 0x4, scoped, tag = 'scoped memory for tpu_custom_call.1']
    #allocation4 [shape = 's32[1]{0}', space=sflag, size = 0x4, scoped, tag = 'scoped memory for tpu_custom_call.1']
    #allocation5 [shape = 'u8[65536]{0}', space=vmem, size = 0x10000, scoped, tag = 'input window, operand 1, single buffered']
    #allocation6 [shape = 's32[1]{0}', space=sflag, size = 0x4, scoped, tag = 'scoped memory for tpu_custom_call.1']
    #allocation7 [shape = 'u8[512]{0}', space=vmem, size = 0x400, scoped, tag = 'input window, operand 2, single buffered']
    #allocation8 [shape = 'u8[2048]{0}', space=vmem, size = 0x800, scoped, tag = 'output window, operand 0, single buffered']
    %8 = vsyncpa [#allocation3], 0
    %9 = vsyncpa [#allocation6], 0
    %10 = vsyncpa [#allocation4], 0
    // Predicated region
    $region2: #{tpu_custom_call.1} parent=1 // pred_check
      _
    $region3: #{tpu_custom_call.1} parent=1 // pred_check_branch
      %12 = sbr.rel (0) target = $region5
    $region4: #{tpu_custom_call.1} parent=1 // pred_region
      %s14 = ssub.s32 256, 256
      %15 = vsyncadd [#allocation3], %s14
      %s17 = sshll.u32 [#allocation2], 4
      %s18 = int_to_ptr.vmem [resolvable:$true] %s17
      %20 = dma.hbm_to_vmem [thread:$0]  %s0, 256, %s18, [#allocation3]
    $region5: #{tpu_custom_call.1} parent=1 // pred_fallthru
      _
    // Predicated region
    $region6: #{tpu_custom_call.1} parent=1 // pred_check
      _
    $region7: #{tpu_custom_call.1} parent=1 // pred_check_branch
      %22 = sbr.rel (0) target = $region9
    $region8: #{tpu_custom_call.1} parent=1 // pred_region
      %s24 = ssub.s32 2048, 2048
      %25 = vsyncadd [#allocation6], %s24
      %s26 = sshll.u32 [#allocation5], 4
      %s27 = int_to_ptr.vmem [resolvable:$true] %s26
      %32 = dma.hbm_to_vmem [thread:$0]  %s1, 2048, %s27, [#allocation6], 64, 64, 4
    $region9: #{tpu_custom_call.1} parent=1 // pred_fallthru
      _
    // Predicated region
    $region10: #{tpu_custom_call.1} parent=1 // pred_check
      _
    $region11: #{tpu_custom_call.1} parent=1 // pred_check_branch
      %34 = sbr.rel (0) target = $region13
    $region12: #{tpu_custom_call.1} parent=1 // pred_region
      %s36 = ssub.s32 16, 16
      %37 = vsyncadd [#allocation6], %s36
      %s39 = sshll.u32 [#allocation7], 4
      %s40 = int_to_ptr.vmem [resolvable:$true] %s39
      %42 = dma.hbm_to_vmem [thread:$0]  %s2, 16, %s40, [#allocation6]
    $region13: #{tpu_custom_call.1} parent=1 // pred_fallthru
      _
    // Predicated region
    $region14: #{tpu_custom_call.1} parent=1 // pred_check
      _
    $region15: #{tpu_custom_call.1} parent=1 // pred_check_branch
      %44 = sbr.rel (0) target = $region17
    $region16: #{tpu_custom_call.1} parent=1 // pred_region
      %45 = dma.done [#allocation3], 256
    $region17: #{tpu_custom_call.1} parent=1 // pred_fallthru
      _
    // Predicated region
    $region18: #{tpu_custom_call.1} parent=1 // pred_check
      _
    $region19: #{tpu_custom_call.1} parent=1 // pred_check_branch
      %47 = sbr.rel (0) target = $region21
    $region20: #{tpu_custom_call.1} parent=1 // pred_region
      %48 = dma.done [#allocation6], 2048
    $region21: #{tpu_custom_call.1} parent=1 // pred_fallthru
      _
    // Predicated region
    $region22: #{tpu_custom_call.1} parent=1 // pred_check
      _
    $region23: #{tpu_custom_call.1} parent=1 // pred_check_branch
      %50 = sbr.rel (0) target = $region25
    $region24: #{tpu_custom_call.1} parent=1 // pred_region
      %51 = dma.done [#allocation6], 16
    $region25: #{tpu_custom_call.1} parent=1 // pred_fallthru
      _
    %v53 = vld [vmem:[#allocation2] sm:$0xff]
    %v54 = vld [vmem:[#allocation2 + $0x8] sm:$0xff]
    %v55 = vpack.c.bf16 %v53, %v53
    %v56 = vpack.c.bf16 %v54, %v54
    %v57 = vld [vmem:[#allocation5] sm:$0xf]
    %v58 = vld [vmem:[#allocation5 + $0x4] sm:$0xf]
    %v59 = vld [vmem:[#allocation5 + $0x8] sm:$0xf]
    %v60 = vld [vmem:[#allocation5 + $0xc] sm:$0xf]
    %v61 = vld [vmem:[#allocation5 + $0x10] sm:$0xf]
    %v62 = vld [vmem:[#allocation5 + $0x14] sm:$0xf]
    %v63 = vld [vmem:[#allocation5 + $0x18] sm:$0xf]
    %v64 = vld [vmem:[#allocation5 + $0x1c] sm:$0xf]
    %v65 = vld [vmem:[#allocation5 + $0x20] sm:$0xf]
    %v66 = vld [vmem:[#allocation5 + $0x24] sm:$0xf]
    %v67 = vld [vmem:[#allocation5 + $0x28] sm:$0xf]
    %v68 = vld [vmem:[#allocation5 + $0x2c] sm:$0xf]
    %v69 = vld [vmem:[#allocation5 + $0x30] sm:$0xf]
    %v70 = vld [vmem:[#allocation5 + $0x34] sm:$0xf]
    %v71 = vld [vmem:[#allocation5 + $0x38] sm:$0xf]
    %v72 = vld [vmem:[#allocation5 + $0x3c] sm:$0xf]
    %v73 = vld [vmem:[#allocation5 + $0x40] sm:$0xf]
    %v74 = vld [vmem:[#allocation5 + $0x44] sm:$0xf]
    %v75 = vld [vmem:[#allocation5 + $0x48] sm:$0xf]
    %v76 = vld [vmem:[#allocation5 + $0x4c] sm:$0xf]
    %v77 = vld [vmem:[#allocation5 + $0x50] sm:$0xf]
    %v78 = vld [vmem:[#allocation5 + $0x54] sm:$0xf]
    %v79 = vld [vmem:[#allocation5 + $0x58] sm:$0xf]
    %v80 = vld [vmem:[#allocation5 + $0x5c] sm:$0xf]
    %v81 = vld [vmem:[#allocation5 + $0x60] sm:$0xf]
    %v82 = vld [vmem:[#allocation5 + $0x64] sm:$0xf]
    %v83 = vld [vmem:[#allocation5 + $0x68] sm:$0xf]
    %v84 = vld [vmem:[#allocation5 + $0x6c] sm:$0xf]
    %v85 = vld [vmem:[#allocation5 + $0x70] sm:$0xf]
    %v86 = vld [vmem:[#allocation5 + $0x74] sm:$0xf]
    %v87 = vld [vmem:[#allocation5 + $0x78] sm:$0xf]
    %v88 = vld [vmem:[#allocation5 + $0x7c] sm:$0xf]
    %v89 = vld [vmem:[#allocation7] sm:$0x1]
    %v91 = vlaneseq
    %v92 = vshrl.u32 %v91, 7
    %v93 = vsub.s32 0, %v92
    %v94 = vrot.slane %v89, %v93
    %v128 = vunpack.c.l.b16 %v57
    %v129 = vunpack.c.l.b16 %v58
    %v130 = vunpack.c.l.b16 %v59
    %v131 = vunpack.c.l.b16 %v60
    %v132 = vunpack.c.l.b16 %v61
    %v133 = vunpack.c.l.b16 %v62
    %v134 = vunpack.c.l.b16 %v63
    %v135 = vunpack.c.l.b16 %v64
    %v136 = vunpack.c.l.b16 %v65
    %v137 = vunpack.c.l.b16 %v66
    %v138 = vunpack.c.l.b16 %v67
    %v139 = vunpack.c.l.b16 %v68
    %v140 = vunpack.c.l.b16 %v69
    %v141 = vunpack.c.l.b16 %v70
    %v142 = vunpack.c.l.b16 %v71
    %v143 = vunpack.c.l.b16 %v72
    %v144 = vunpack.c.l.b16 %v73
    %v145 = vunpack.c.l.b16 %v74
    %v146 = vunpack.c.l.b16 %v75
    %v147 = vunpack.c.l.b16 %v76
    %v148 = vunpack.c.l.b16 %v77
    %v149 = vunpack.c.l.b16 %v78
    %v150 = vunpack.c.l.b16 %v79
    %v151 = vunpack.c.l.b16 %v80
    %v152 = vunpack.c.l.b16 %v81
    %v153 = vunpack.c.l.b16 %v82
    %v154 = vunpack.c.l.b16 %v83
    %v155 = vunpack.c.l.b16 %v84
    %v156 = vunpack.c.l.b16 %v85
    %v157 = vunpack.c.l.b16 %v86
    %v158 = vunpack.c.l.b16 %v87
    %v159 = vunpack.c.l.b16 %v88
    %v160 = vpack.c.b16 %v129, %v128
    %v161 = vpack.c.b16 %v131, %v130
    %v162 = vpack.c.b16 %v133, %v132
    %v163 = vpack.c.b16 %v135, %v134
    %v164 = vpack.c.b16 %v137, %v136
    %v165 = vpack.c.b16 %v139, %v138
    %v166 = vpack.c.b16 %v141, %v140
    %v167 = vpack.c.b16 %v143, %v142
    %v168 = vpack.c.b16 %v145, %v144
    %v169 = vpack.c.b16 %v147, %v146
    %v170 = vpack.c.b16 %v149, %v148
    %v171 = vpack.c.b16 %v151, %v150
    %v172 = vpack.c.b16 %v153, %v152
    %v173 = vpack.c.b16 %v155, %v154
    %v174 = vpack.c.b16 %v157, %v156
    %v175 = vpack.c.b16 %v159, %v158
    %192 = vmatprep.subr.bf16.mxu0 0
    %193 = vmatpush1.bf16.msra.mxu0 %v160
    %194 = vmatprep.subr.bf16.mxu0 0
    %195 = vmatpush1.bf16.msra.mxu0 %v161
    %196 = vmatprep.subr.bf16.mxu0 0
    %197 = vmatpush1.bf16.msra.mxu0 %v162
    %198 = vmatprep.subr.bf16.mxu0 0
    %199 = vmatpush1.bf16.msra.mxu0 %v163
    %200 = vmatprep.subr.bf16.mxu0 0
    %201 = vmatpush1.bf16.msra.mxu0 %v164
    %202 = vmatprep.subr.bf16.mxu0 0
    %203 = vmatpush1.bf16.msra.mxu0 %v165
    %204 = vmatprep.subr.bf16.mxu0 0
    %205 = vmatpush1.bf16.msra.mxu0 %v166
    %206 = vmatprep.subr.bf16.mxu0 0
    %207 = vmatpush1.bf16.msra.mxu0 %v167
    %208 = vmatprep.subr.bf16.mxu0 0
    %209 = vmatpush1.bf16.msra.mxu0 %v168
    %210 = vmatprep.subr.bf16.mxu0 0
    %211 = vmatpush1.bf16.msra.mxu0 %v169
    %212 = vmatprep.subr.bf16.mxu0 0
    %213 = vmatpush1.bf16.msra.mxu0 %v170
    %214 = vmatprep.subr.bf16.mxu0 0
    %215 = vmatpush1.bf16.msra.mxu0 %v171
    %216 = vmatprep.subr.bf16.mxu0 0
    %217 = vmatpush1.bf16.msra.mxu0 %v172
    %218 = vmatprep.subr.bf16.mxu0 0
    %219 = vmatpush1.bf16.msra.mxu0 %v173
    %220 = vmatprep.subr.bf16.mxu0 0
    %221 = vmatpush1.bf16.msra.mxu0 %v174
    %222 = vmatprep.subr.bf16.mxu0 0
    %223 = vmatpush1.bf16.msra.mxu0 %v175
    %224 = vmatprep.mubr.bf16.mxu0 %v56
    %225 = vmatmul.mubr.bf16.gmra.mrb[0].mxu0 %v55
    %v226 = vpop.f32.mrb[0].mxu0
    %v227 = vadd.f32 %v94, %v226
    %v228 = vpop.f32.mrb[0].mxu0
    %v229 = vpop.f32.mrb[0].mxu0
    %v230 = vpop.f32.mrb[0].mxu0
    %231 = vdwg.mxu0
    %v232 = vpack.c.bf16 %v227, %v227
    %233 = vst [vmem:[#allocation8] sm:$0xf] %v232
    // Predicated region
    $region26: #{tpu_custom_call.1} parent=1 // pred_check
      _
    $region27: #{tpu_custom_call.1} parent=1 // pred_check_branch
      %235 = sbr.rel (0) target = $region29
    $region28: #{tpu_custom_call.1} parent=1 // pred_region
      %s237 = ssub.s32 64, 64
      %238 = vsyncadd [#allocation4], %s237
      %s240 = sshll.u32 [#allocation8], 4
      %s241 = int_to_ptr.vmem [resolvable:$true] %s240
      %243 = dma.vmem_to_hbm [thread:$0]  %s241, 64, %s3, [#allocation4]
    $region29: #{tpu_custom_call.1} parent=1 // pred_fallthru
      _
    // Predicated region
    $region30: #{tpu_custom_call.1} parent=1 // pred_check
      _
    $region31: #{tpu_custom_call.1} parent=1 // pred_check_branch
      %245 = sbr.rel (0) target = $region33
    $region32: #{tpu_custom_call.1} parent=1 // pred_region
      %246 = dma.done [#allocation4], 64
    $region33: #{tpu_custom_call.1} parent=1 // pred_fallthru
      _
    %247 = vsyncpa [#allocation3], 1
    %248 = vsyncpa [#allocation6], 1
    %249 = vsyncpa [#allocation4], 1

</llo_original>
